<compile_context>
chip_gen: v7x
topology: tpu7x:2x2x1
jax: 0.10.0
libtpu: 0.0.40
codegen_flags: <defaults>
</compile_context>

<pallas_src>
import jax
import jax.numpy as jnp
from jax.experimental import pallas as pl
from jax.experimental.pallas import tpu as pltpu

EPS = 1e-6


def _round_up(n, m):
    return ((n + m - 1) // m) * m


def residual_layer_kernel(x_ref, gamma_ref, beta_ref, w_ref, b_ref, o_ref,
                          y_ref):
    # x_ref:       (TM, H)  f32   same block for every j of this row tile
    # gamma/beta:  (1, H)   f32   resident
    # w_ref:       (H, TN)  bf16  (in, out) slab
    # b_ref:       (1, TN)  f32
    # o_ref:       (TM, TN) output slab
    # y_ref:       (TM, H)  bf16 scratch: LayerNorm(x) for this row tile
    j = pl.program_id(1)
    tn = o_ref.shape[-1]

    @pl.when(j == 0)
    def _():
        x = x_ref[...]
        # One-pass LayerNorm statistics: both cross-lane reductions come from
        # the same operand (independent XLU work, shorter dependency chain).
        inv_h = 1.0 / x.shape[-1]
        mean = jnp.sum(x, axis=-1, keepdims=True) * inv_h
        mean_sq = jnp.sum(x * x, axis=-1, keepdims=True) * inv_h
        var = mean_sq - mean * mean
        y = (x - mean) * jax.lax.rsqrt(var + EPS) * gamma_ref[...] \
            + beta_ref[...]
        y_ref[...] = y.astype(jnp.bfloat16)

    # Sublayer Linear(H -> TN slab) on the MXU: bf16 operands, f32 accumulate.
    z = jnp.dot(y_ref[...], w_ref[...], preferred_element_type=jnp.float32)
    z = z + b_ref[...]

    # Dropout in eval mode = identity.  Residual add re-reads only the TN
    # columns of the x tile (no long-lived f32 copy across the matmul).
    col = pl.multiple_of(j * tn, tn)
    o_ref[...] = (x_ref[:, pl.ds(col, tn)] + z).astype(o_ref.dtype)


def _vmem_budget_bytes():
    """~85% of physical VMEM so Mosaic keeps internal-scratch headroom."""
    try:
        cap = pltpu.get_tpu_info().vmem_capacity_bytes
    except Exception:
        cap = 64 * 1024 * 1024  # conservative fallback (v7x per-core size)
    return int(cap * 0.85)


def _choose_tiles(rows, H, vmem_bytes):
    """Pick (tm, tn, w_bufs) so weight slab + streaming buffers fit VMEM."""
    # Prefer the whole (H, H) bf16 weight resident and single-buffered.  If it
    # would exceed ~1/4 of the budget, tile the output (N) dimension; tiled
    # slabs are double-buffered so the next slab's DMA hides under the matmul.
    w_cap = vmem_bytes // 4
    tn, w_bufs = H, 1
    while w_bufs * H * tn * 2 > w_cap and tn % 2 == 0 and tn > 128:
        tn //= 2
        w_bufs = 2
    # Row tile: remaining budget over x double buffers, out double buffers,
    # the bf16 y scratch and ~2 live f32 intermediates per row.
    per_row = 2 * H * 4 + 2 * tn * 4 + H * 2 + 2 * H * 4
    budget = vmem_bytes - w_bufs * H * tn * 2 - (4 << 20)
    tm = max(8, min(1024, budget // per_row))
    tm = min(tm, _round_up(rows, 8))
    tm = (tm // 8) * 8
    return tm, tn, w_bufs


@jax.jit
def residual_layer(x, gamma, beta, w_t, b):
    """x: (B, S, H). gamma/beta/b: (H,). w_t: (H, H) = W.T, laid out (in, out)."""
    B, S, H = x.shape
    rows = B * S
    vmem_bytes = _vmem_budget_bytes()
    tm, tn, w_bufs = _choose_tiles(rows, H, vmem_bytes)

    # Pad rows to a multiple of tm: no partial grid blocks, so LayerNorm never
    # runs on uninitialized padding rows.
    rows_padded = _round_up(rows, tm)
    x2 = x.reshape(rows, H).astype(jnp.float32)
    if rows_padded != rows:
        x2 = jnp.pad(x2, ((0, rows_padded - rows), (0, 0)))

    # Pre-cast small parameters on the host (no per-tile casts in the kernel);
    # weight as bf16 for native MXU rate and half the VMEM/HBM traffic.
    gamma2 = gamma.reshape(1, H).astype(jnp.float32)
    beta2 = beta.reshape(1, H).astype(jnp.float32)
    b2 = b.reshape(1, H).astype(jnp.float32)
    w_bf16 = w_t.astype(jnp.bfloat16)

    grid = (rows_padded // tm, H // tn)

    out = pl.pallas_call(
        residual_layer_kernel,
        out_shape=jax.ShapeDtypeStruct((rows_padded, H), x.dtype),
        grid_spec=pltpu.PrefetchScalarGridSpec(
            num_scalar_prefetch=0,
            grid=grid,
            in_specs=[
                # x tile: streamed over i, identical across j (no re-DMA).
                pl.BlockSpec((tm, H), lambda i, j: (i, 0)),
                # gamma / beta: constant index -> single-buffered.
                pl.BlockSpec((1, H), lambda i, j: (0, 0),
                             pipeline_mode=pl.Buffered(1)),
                pl.BlockSpec((1, H), lambda i, j: (0, 0),
                             pipeline_mode=pl.Buffered(1)),
                # W^T slab (bf16): single-buffered when fully resident,
                # double-buffered when N-tiled.
                pl.BlockSpec((H, tn), lambda i, j: (0, j),
                             pipeline_mode=pl.Buffered(w_bufs)),
                # bias slab.
                pl.BlockSpec((1, tn), lambda i, j: (0, j),
                             pipeline_mode=pl.Buffered(w_bufs)),
            ],
            out_specs=pl.BlockSpec((tm, tn), lambda i, j: (i, j)),
            scratch_shapes=[pltpu.VMEM((tm, H), jnp.bfloat16)],
        ),
        compiler_params=pltpu.CompilerParams(
            dimension_semantics=("parallel", "arbitrary"),
            vmem_limit_bytes=vmem_bytes,
        ),
    )(x2, gamma2, beta2, w_bf16, b2)

    return out[:rows].reshape(B, S, H)


def reference(x, gamma, beta, w_t, b):
    xf = x.astype(jnp.float32)
    mean = jnp.mean(xf, axis=-1, keepdims=True)
    var = jnp.mean((xf - mean) ** 2, axis=-1, keepdims=True)
    y = (xf - mean) * jax.lax.rsqrt(var + EPS) * gamma + beta
    z = y @ w_t + b
    return x + z


if __name__ == "__main__":
    # Small but lane-dense shapes: H = 128 keeps output stores unmasked.
    B, S, H = 2, 8, 128
    key = jax.random.PRNGKey(0)
    kx, kw, kb = jax.random.split(key, 3)

    x = jax.random.normal(kx, (B, S, H), dtype=jnp.float32)

    # torch default LayerNorm init: gamma=1, beta=0; small random Linear.
    gamma = jnp.ones((H,), dtype=jnp.float32)
    beta = jnp.zeros((H,), dtype=jnp.float32)
    w = jax.random.normal(kw, (H, H), dtype=jnp.float32) * (1.0 / jnp.sqrt(H))
    w_t = w.T  # (in, out)
    b = jax.random.normal(kb, (H,), dtype=jnp.float32) * 0.01

    out = residual_layer(x, gamma, beta, w_t, b)
    out = jax.block_until_ready(out)

    ref = reference(x, gamma, beta, w_t, b)
    assert out.shape == (B, S, H)
    # bf16 matmul operands -> ~1e-3 level error vs the pure-f32 reference.
    assert jnp.allclose(out, ref, atol=2e-2, rtol=2e-2), "mismatch vs reference"

    print("KERNEL_OK")
</pallas_src>

<mosaic_0001>
module attributes {stable_mosaic.version = 11 : i64} {
  func.func @residual_layer_kernel(%arg0: i32, %arg1: i32, %arg2: memref<16x128xf32, #tpu.memory_space<vmem>>, %arg3: memref<1x128xf32, #tpu.memory_space<vmem>>, %arg4: memref<1x128xf32, #tpu.memory_space<vmem>>, %arg5: memref<128x128xbf16, #tpu.memory_space<vmem>>, %arg6: memref<1x128xf32, #tpu.memory_space<vmem>>, %arg7: memref<16x128xf32, #tpu.memory_space<vmem>>, %arg8: memref<16x128xbf16, #tpu.memory_space<vmem>>) attributes {dimension_semantics = [#tpu.dimension_semantics<parallel>, #tpu.dimension_semantics<arbitrary>], iteration_bounds = array<i64: 1, 1>, scalar_prefetch = 0 : i64, scratch_operands = 1 : i64, tpu.core_type = #tpu.core_type<tc>, window_params = [{transform_indices = @transform_0, window_bounds = array<i64: 16, 128>}, {pipeline_mode = #tpu.pipeline_mode<synchronous>, transform_indices = @transform_1, window_bounds = array<i64: 1, 128>}, {pipeline_mode = #tpu.pipeline_mode<synchronous>, transform_indices = @transform_2, window_bounds = array<i64: 1, 128>}, {pipeline_mode = #tpu.pipeline_mode<synchronous>, transform_indices = @transform_3, window_bounds = array<i64: 128, 128>}, {pipeline_mode = #tpu.pipeline_mode<synchronous>, transform_indices = @transform_4, window_bounds = array<i64: 1, 128>}, {transform_indices = @transform_5, window_bounds = array<i64: 16, 128>}]} {
    %c0_i32 = arith.constant 0 : i32
    %0 = arith.cmpi eq, %arg1, %c0_i32 : i32
    %1 = arith.extui %0 : i1 to i32
    %c0_i32_0 = arith.constant 0 : i32
    %2 = arith.cmpi ne, %1, %c0_i32_0 : i32
    scf.if %2 {
      %c0_9 = arith.constant 0 : index
      %c0_10 = arith.constant 0 : index
      %15 = vector.load %arg2[%c0_9, %c0_10] : memref<16x128xf32, #tpu.memory_space<vmem>>, vector<16x128xf32>
      %cst_11 = arith.constant dense<0.000000e+00> : vector<16xf32>
      %16 = vector.multi_reduction <add>, %15, %cst_11 [1] : vector<16x128xf32> to vector<16xf32>
      %17 = vector.shape_cast %16 : vector<16xf32> to vector<16x1xf32>
      %cst_12 = arith.constant 7.812500e-03 : f32
      %18 = vector.broadcast %cst_12 : f32 to vector<16x1xf32>
      %19 = arith.mulf %17, %18 : vector<16x1xf32>
      %20 = arith.mulf %15, %15 : vector<16x128xf32>
      %cst_13 = arith.constant dense<0.000000e+00> : vector<16xf32>
      %21 = vector.multi_reduction <add>, %20, %cst_13 [1] : vector<16x128xf32> to vector<16xf32>
      %22 = vector.shape_cast %21 : vector<16xf32> to vector<16x1xf32>
      %cst_14 = arith.constant 7.812500e-03 : f32
      %23 = vector.broadcast %cst_14 : f32 to vector<16x1xf32>
      %24 = arith.mulf %22, %23 : vector<16x1xf32>
      %25 = arith.mulf %19, %19 : vector<16x1xf32>
      %26 = arith.subf %24, %25 : vector<16x1xf32>
      %27 = vector.broadcast %19 : vector<16x1xf32> to vector<16x128xf32>
      %28 = arith.subf %15, %27 : vector<16x128xf32>
      %cst_15 = arith.constant 9.99999997E-7 : f32
      %29 = vector.broadcast %cst_15 : f32 to vector<16x1xf32>
      %30 = arith.addf %26, %29 : vector<16x1xf32>
      %31 = math.rsqrt %30 : vector<16x1xf32>
      %32 = vector.broadcast %31 : vector<16x1xf32> to vector<16x128xf32>
      %33 = arith.mulf %28, %32 : vector<16x128xf32>
      %c0_16 = arith.constant 0 : index
      %c0_17 = arith.constant 0 : index
      %34 = vector.load %arg3[%c0_16, %c0_17] : memref<1x128xf32, #tpu.memory_space<vmem>>, vector<1x128xf32>
      %35 = vector.broadcast %34 : vector<1x128xf32> to vector<16x128xf32>
      %36 = arith.mulf %33, %35 : vector<16x128xf32>
      %c0_18 = arith.constant 0 : index
      %c0_19 = arith.constant 0 : index
      %37 = vector.load %arg4[%c0_18, %c0_19] : memref<1x128xf32, #tpu.memory_space<vmem>>, vector<1x128xf32>
      %38 = vector.broadcast %37 : vector<1x128xf32> to vector<16x128xf32>
      %39 = arith.addf %36, %38 : vector<16x128xf32>
      %40 = arith.truncf %39 : vector<16x128xf32> to vector<16x128xbf16>
      %c0_20 = arith.constant 0 : index
      %c0_21 = arith.constant 0 : index
      %41 = vector.load %arg8[%c0_20, %c0_21] : memref<16x128xbf16, #tpu.memory_space<vmem>>, vector<16x128xbf16>
      tpu.vector_store %arg8[%c0_20, %c0_21], %40 {strides = array<i32>} : memref<16x128xbf16, #tpu.memory_space<vmem>>, vector<16x128xbf16>,
    } else {
    }
    %c0 = arith.constant 0 : index
    %c0_1 = arith.constant 0 : index
    %3 = vector.load %arg8[%c0, %c0_1] : memref<16x128xbf16, #tpu.memory_space<vmem>>, vector<16x128xbf16>
    %c0_2 = arith.constant 0 : index
    %c0_3 = arith.constant 0 : index
    %4 = vector.load %arg5[%c0_2, %c0_3] : memref<128x128xbf16, #tpu.memory_space<vmem>>, vector<128x128xbf16>
    %cst = arith.constant dense<0.000000e+00> : vector<16x128xf32>
    %5 = tpu.matmul %3, %4, %cst {dimension_numbers = #tpu.dot_dimension_numbers<[1], [0], [0], [1], [0, 0, 1, 1], [], []>} : vector<16x128xbf16>, vector<128x128xbf16>, vector<16x128xf32> -> vector<16x128xf32>
    %c0_4 = arith.constant 0 : index
    %c0_5 = arith.constant 0 : index
    %6 = vector.load %arg6[%c0_4, %c0_5] : memref<1x128xf32, #tpu.memory_space<vmem>>, vector<1x128xf32>
    %7 = vector.broadcast %6 : vector<1x128xf32> to vector<16x128xf32>
    %8 = arith.addf %5, %7 : vector<16x128xf32>
    %c128_i32 = arith.constant 128 : i32
    %9 = arith.muli %arg1, %c128_i32 : i32
    %10 = tpu.assume_multiple %9, 128 : i32
    %c0_6 = arith.constant 0 : index
    %11 = arith.index_cast %10 : i32 to index
    %12 = vector.load %arg2[%c0_6, %11] : memref<16x128xf32, #tpu.memory_space<vmem>>, vector<16x128xf32>
    %13 = arith.addf %12, %8 : vector<16x128xf32>
    %c0_7 = arith.constant 0 : index
    %c0_8 = arith.constant 0 : index
    %14 = vector.load %arg7[%c0_7, %c0_8] : memref<16x128xf32, #tpu.memory_space<vmem>>, vector<16x128xf32>
    tpu.vector_store %arg7[%c0_7, %c0_8], %13 {strides = array<i32>} : memref<16x128xf32, #tpu.memory_space<vmem>>, vector<16x128xf32>,
    return
  }
  func.func @transform_0(%arg0: i32, %arg1: i32) -> (i32, i32) {
    %c0_i32 = arith.constant 0 : i32
    %c0_i32_0 = arith.constant 0 : i32
    return %arg0, %c0_i32 : i32, i32
  }
  func.func @transform_1(%arg0: i32, %arg1: i32) -> (i32, i32) {
    %c0_i32 = arith.constant 0 : i32
    %c0_i32_0 = arith.constant 0 : i32
    %c0_i32_1 = arith.constant 0 : i32
    return %c0_i32, %c0_i32_0 : i32, i32
  }
  func.func @transform_2(%arg0: i32, %arg1: i32) -> (i32, i32) {
    %c0_i32 = arith.constant 0 : i32
    %c0_i32_0 = arith.constant 0 : i32
    %c0_i32_1 = arith.constant 0 : i32
    return %c0_i32, %c0_i32_0 : i32, i32
  }
  func.func @transform_3(%arg0: i32, %arg1: i32) -> (i32, i32) {
    %c0_i32 = arith.constant 0 : i32
    %c0_i32_0 = arith.constant 0 : i32
    return %c0_i32, %arg1 : i32, i32
  }
  func.func @transform_4(%arg0: i32, %arg1: i32) -> (i32, i32) {
    %c0_i32 = arith.constant 0 : i32
    %c0_i32_0 = arith.constant 0 : i32
    return %c0_i32, %arg1 : i32, i32
  }
  func.func @transform_5(%arg0: i32, %arg1: i32) -> (i32, i32) {
    %c0_i32 = arith.constant 0 : i32
    return %arg0, %arg1 : i32, i32
  }
}

</mosaic_0001>

<llo_original>
// kernel: residual_layer.1
$region0: #{residual_layer.1}
  #allocation0 [shape = 'u32[]', space=smem, size = 0x4, offset = 0x4, fixed_abs, tag = 'smem constant byte address 0x4 - core index']
  #allocation1 [shape = 'u32[144,128]{1,0:T(1,128)}', space=vmem, size = 0x12000, scoped, tag = 'internal scratch']
  #allocation2 [shape = 'bf16[16,128]{1,0:T(16,128)(2,1)}', space=vmem, size = 0x1000, scoped, tag = 'scratch operand']
  %s0 = inlined_call_operand.vmem [shape: f32[16,128], index: 0, kind: input, shape index: {}]
  %s1 = inlined_call_operand.vmem [shape: f32[1,128], index: 1, kind: input, shape index: {}]
  %s2 = inlined_call_operand.vmem [shape: f32[1,128], index: 2, kind: input, shape index: {}]
  %s3 = inlined_call_operand.vmem [shape: bf16[128,128], index: 3, kind: input, shape index: {}]
  %s4 = inlined_call_operand.vmem [shape: f32[1,128], index: 4, kind: input, shape index: {}]
  %s5 = inlined_call_operand.hbm [shape: f32[16,128], index: 5, kind: output, shape index: {}]
  %s6 = sld [smem:[#allocation0]]
  $region34: #{residual_layer.1} parent=0
    _
  %s8 = ssub.s32 1, %s6
  %s9 = scalar_select 0, %s8, %s6
  $region1: #{residual_layer.1} parent=0
    #allocation3 [shape = 'u8[8192]{0}', space=vmem, size = 0x2000, scoped, tag = 'output window, operand 0, single buffered']
    #allocation4 [shape = 's32[1]{0}', space=sflag, size = 0x4, scoped, tag = 'scoped memory for residual_layer.1']
    %10 = vsyncpa [#allocation4], 0
    // Predicated region
    $region2: #{residual_layer.1} parent=1 // pred_check
      _
    $region3: #{residual_layer.1} parent=1 // pred_check_branch
      %12 = sbr.rel (0) target = $region5
    $region4: #{residual_layer.1} parent=1 // pred_region
      _
    $region5: #{residual_layer.1} parent=1 // pred_fallthru
      _
    // Predicated region
    $region6: #{residual_layer.1} parent=1 // pred_check
      _
    $region7: #{residual_layer.1} parent=1 // pred_check_branch
      %14 = sbr.rel (0) target = $region9
    $region8: #{residual_layer.1} parent=1 // pred_region
      _
    $region9: #{residual_layer.1} parent=1 // pred_fallthru
      _
    // Predicated region
    $region10: #{residual_layer.1} parent=1 // pred_check
      _
    $region11: #{residual_layer.1} parent=1 // pred_check_branch
      %16 = sbr.rel (0) target = $region13
    $region12: #{residual_layer.1} parent=1 // pred_region
      _
    $region13: #{residual_layer.1} parent=1 // pred_fallthru
      _
    // Predicated region
    $region14: #{residual_layer.1} parent=1 // pred_check
      _
    $region15: #{residual_layer.1} parent=1 // pred_check_branch
      %18 = sbr.rel (0) target = $region17
    $region16: #{residual_layer.1} parent=1 // pred_region
      _
    $region17: #{residual_layer.1} parent=1 // pred_fallthru
      _
    // Predicated region
    $region18: #{residual_layer.1} parent=1 // pred_check
      _
    $region19: #{residual_layer.1} parent=1 // pred_check_branch
      %20 = sbr.rel (0) target = $region21
    $region20: #{residual_layer.1} parent=1 // pred_region
      _
    $region21: #{residual_layer.1} parent=1 // pred_fallthru
      _
    %p22 = scmp.eq.s32.totalorder 0, 0
    // Predicated region
    $region22: #{residual_layer.1} parent=1 // pred_check
      %p23 = pneg %p22
    $region23: #{residual_layer.1} parent=1 // pred_check_branch
      %25 = sbr.rel (%p23) target = $region25
    $region24: #{residual_layer.1} parent=1 // pred_region
      %v26 = vld [vmem:[%s0] sm:$0xff]
      %v27 = vld [vmem:[%s0 + $0x8] sm:$0xff]
      %28 = vadd.xlane.f32.xlu0 %v26
      %v29 = vpop.xlane.xlu0 %28
      %30 = vadd.xlane.f32.xlu0 %v27
      %v31 = vpop.xlane.xlu0 %30
      %v32 = vmul.f32 %v29, 0.0078125
      %v33 = vmul.f32 %v31, 0.0078125
      %v34 = vmul.f32 %v26, %v26
      %v35 = vmul.f32 %v27, %v27
      %36 = vadd.xlane.f32.xlu0 %v34
      %v37 = vpop.xlane.xlu0 %36
      %38 = vadd.xlane.f32.xlu0 %v35
      %v39 = vpop.xlane.xlu0 %38
      %v40 = vmul.f32 %v37, 0.0078125
      %v41 = vmul.f32 %v39, 0.0078125
      %v42 = vmul.f32 %v32, %v32
      %v43 = vmul.f32 %v33, %v33
      %v44 = vsub.f32 %v40, %v42
      %v45 = vsub.f32 %v41, %v43
      %v46 = vsub.f32 %v26, %v32
      %v47 = vsub.f32 %v27, %v33
      %v48 = vadd.f32 %v44, 1e-06
      %v49 = vadd.f32 %v45, 1e-06
      %v50 = vrsqrt.pop %v48
      %v51 = vrsqrt.pop %v49
      %v52 = vmul.f32 %v46, %v50
      %v53 = vmul.f32 %v47, %v51
      %v54 = vld [vmem:[%s1] sm:$0x1]
      %v56 = vlaneseq
      %v57 = vshrl.u32 %v56, 7
      %v58 = vsub.s32 0, %v57
      %v59 = vrot.slane %v54, %v58
      %v61 = vmul.f32 %v52, %v59
      %v62 = vmul.f32 %v53, %v59
      %v63 = vld [vmem:[%s2] sm:$0x1]
      %v65 = vlaneseq
      %v66 = vshrl.u32 %v65, 7
      %v67 = vsub.s32 0, %v66
      %v68 = vrot.slane %v63, %v67
      %v70 = vadd.f32 %v61, %v68
      %v71 = vadd.f32 %v62, %v68
      %v72 = vpack.c.bf16 %v71, %v70
      %73 = vst [vmem:[#allocation2] sm:$0xff] %v72
    $region25: #{residual_layer.1} parent=1 // pred_fallthru
      _
    %v74 = vld [vmem:[#allocation2] sm:$0xff]
    %v75 = vld [vmem:[%s3] sm:$0xf]
    %v76 = vld [vmem:[%s3 + $0x4] sm:$0xf]
    %v77 = vld [vmem:[%s3 + $0x8] sm:$0xf]
    %v78 = vld [vmem:[%s3 + $0xc] sm:$0xf]
    %v79 = vld [vmem:[%s3 + $0x10] sm:$0xf]
    %v80 = vld [vmem:[%s3 + $0x14] sm:$0xf]
    %v81 = vld [vmem:[%s3 + $0x18] sm:$0xf]
    %v82 = vld [vmem:[%s3 + $0x1c] sm:$0xf]
    %v83 = vld [vmem:[%s3 + $0x20] sm:$0xf]
    %v84 = vld [vmem:[%s3 + $0x24] sm:$0xf]
    %v85 = vld [vmem:[%s3 + $0x28] sm:$0xf]
    %v86 = vld [vmem:[%s3 + $0x2c] sm:$0xf]
    %v87 = vld [vmem:[%s3 + $0x30] sm:$0xf]
    %v88 = vld [vmem:[%s3 + $0x34] sm:$0xf]
    %v89 = vld [vmem:[%s3 + $0x38] sm:$0xf]
    %v90 = vld [vmem:[%s3 + $0x3c] sm:$0xf]
    %v91 = vld [vmem:[%s4] sm:$0x1]
    %v93 = vlaneseq
    %v94 = vshrl.u32 %v93, 7
    %v95 = vsub.s32 0, %v94
    %v96 = vrot.slane %v91, %v95
    %v114 = vunpack.c.l.b16 %v75
    %v115 = vunpack.c.l.b16 %v76
    %v116 = vunpack.c.l.b16 %v77
    %v117 = vunpack.c.l.b16 %v78
    %v118 = vunpack.c.l.b16 %v79
    %v119 = vunpack.c.l.b16 %v80
    %v120 = vunpack.c.l.b16 %v81
    %v121 = vunpack.c.l.b16 %v82
    %v122 = vunpack.c.l.b16 %v83
    %v123 = vunpack.c.l.b16 %v84
    %v124 = vunpack.c.l.b16 %v85
    %v125 = vunpack.c.l.b16 %v86
    %v126 = vunpack.c.l.b16 %v87
    %v127 = vunpack.c.l.b16 %v88
    %v128 = vunpack.c.l.b16 %v89
    %v129 = vunpack.c.l.b16 %v90
    %v130 = vpack.c.b16 %v115, %v114
    %v131 = vpack.c.b16 %v117, %v116
    %v132 = vpack.c.b16 %v119, %v118
    %v133 = vpack.c.b16 %v121, %v120
    %v134 = vpack.c.b16 %v123, %v122
    %v135 = vpack.c.b16 %v125, %v124
    %v136 = vpack.c.b16 %v127, %v126
    %v137 = vpack.c.b16 %v129, %v128
    %146 = vmatprep.subr.bf16.mxu0 0
    %147 = vmatpush1.bf16.msra.mxu0 %v130
    %148 = vmatprep.subr.bf16.mxu0 0
    %149 = vmatpush1.bf16.msra.mxu0 %v131
    %150 = vmatprep.subr.bf16.mxu0 0
    %151 = vmatpush1.bf16.msra.mxu0 %v132
    %152 = vmatprep.subr.bf16.mxu0 0
    %153 = vmatpush1.bf16.msra.mxu0 %v133
    %154 = vmatprep.subr.bf16.mxu0 0
    %155 = vmatpush1.bf16.msra.mxu0 %v134
    %156 = vmatprep.subr.bf16.mxu0 0
    %157 = vmatpush1.bf16.msra.mxu0 %v135
    %158 = vmatprep.subr.bf16.mxu0 0
    %159 = vmatpush1.bf16.msra.mxu0 %v136
    %160 = vmatprep.subr.bf16.mxu0 0
    %161 = vmatpush1.bf16.msra.mxu0 %v137
    %162 = vmatprep.subr.bf16.mxu0 0
    %163 = vmatpush1.bf16.msra.mxu0 0
    %164 = vmatprep.subr.bf16.mxu0 0
    %165 = vmatpush1.bf16.msra.mxu0 0
    %166 = vmatprep.subr.bf16.mxu0 0
    %167 = vmatpush1.bf16.msra.mxu0 0
    %168 = vmatprep.subr.bf16.mxu0 0
    %169 = vmatpush1.bf16.msra.mxu0 0
    %170 = vmatprep.subr.bf16.mxu0 0
    %171 = vmatpush1.bf16.msra.mxu0 0
    %172 = vmatprep.subr.bf16.mxu0 0
    %173 = vmatpush1.bf16.msra.mxu0 0
    %174 = vmatprep.subr.bf16.mxu0 0
    %175 = vmatpush1.bf16.msra.mxu0 0
    %176 = vmatprep.subr.bf16.mxu0 0
    %177 = vmatpush1.bf16.msra.mxu0 0
    %178 = vmatprep.mubr.bf16.mxu0 0
    %179 = vmatmul.mubr.bf16.gmra.mrb[0].mxu0 %v74
    %v180 = vpop.f32.mrb[0].mxu0
    %v181 = vadd.f32 %v96, %v180
    %v182 = vpop.f32.mrb[0].mxu0
    %v183 = vpop.f32.mrb[0].mxu0
    %v184 = vadd.f32 %v96, %v183
    %v185 = vpop.f32.mrb[0].mxu0
    %186 = vdwg.mxu0
    %s187 = smul.u32 0, 128
    %s188 = sshra.s32 %s187, 7
    %s189 = sand.u32 %s187, 127
    %s190 = scalar_lea.vmem %s0, %s188
    %v191 = vld [vmem:[%s190] sm:$0xff]
    %v192 = vld [vmem:[%s190 + $0x8] sm:$0xff]
    %v193 = vadd.f32 %v191, %v181
    %v194 = vadd.f32 %v192, %v184
    %195 = vst [vmem:[#allocation3] sm:$0xff] %v193
    %196 = vst [vmem:[#allocation3 + $0x8] sm:$0xff] %v194
    // Predicated region
    $region26: #{residual_layer.1} parent=1 // pred_check
      _
    $region27: #{residual_layer.1} parent=1 // pred_check_branch
      %198 = sbr.rel (0) target = $region29
    $region28: #{residual_layer.1} parent=1 // pred_region
      %s200 = ssub.s32 256, 256
      %201 = vsyncadd [#allocation4], %s200
      %s202 = sshll.u32 [#allocation3], 4
      %s203 = int_to_ptr.vmem [resolvable:$true] %s202
      %208 = dma.vmem_to_hbm [thread:$0]  %s203, 256, %s5, [#allocation4], 128, 128, 8
    $region29: #{residual_layer.1} parent=1 // pred_fallthru
      _
    // Predicated region
    $region30: #{residual_layer.1} parent=1 // pred_check
      _
    $region31: #{residual_layer.1} parent=1 // pred_check_branch
      %210 = sbr.rel (0) target = $region33
    $region32: #{residual_layer.1} parent=1 // pred_region
      %211 = dma.done [#allocation4], 256
    $region33: #{residual_layer.1} parent=1 // pred_fallthru
      _
    %212 = vsyncpa [#allocation4], 1

</llo_original>
